<compile_context>
chip_gen: v6e
topology: v6e:2x2x1
jax: 0.10.0
libtpu: 0.0.40
codegen_flags: <defaults>
</compile_context>

<pallas_src>
import jax
import jax.numpy as jnp
from jax import lax
from jax.experimental import pallas as pl
from jax.experimental.pallas import tpu as pltpu


def _round_up(x, m):
    return (x + m - 1) // m * m


def _critic_kernel(task_ref, worker_ref, act_ref,
                   w1_ref, ab1_ref, w2_ref, b2_ref,
                   out_ref, x_ref):
    """Fused Critic forward: both Q heads, whole batch, one invocation."""
    B, T, D = task_ref.shape
    W = worker_ref.shape[1]
    H2 = ab1_ref.shape[1]              # 2 * hidden_dim (both heads on lanes)
    BT, BW = B * T, B * W
    BT_al = x_ref.shape[0] - BW        # task rows padded to bf16 sublane pack
    N = B * W * T

    # ---- Stack task + worker rows into one bf16 operand so layer 1 is a
    #      single MXU push (kernel is MXU-latency bound at these sizes). ----
    x_ref[0:BT, :] = task_ref[...].reshape(BT, D).astype(x_ref.dtype)
    if BT_al > BT:                     # static; only taken if bf16 pad needed
        x_ref[BT:BT_al, :] = jnp.zeros((BT_al - BT, D), x_ref.dtype)
    x_ref[BT_al:BT_al + BW, :] = worker_ref[...].reshape(BW, D).astype(x_ref.dtype)

    # w1 packs [w1t_q1 | w1t_q2 | w1w_q1 | w1w_q2] on the lane axis (D, 4H).
    # Task rows use columns 0:2H, worker rows use columns 2H:4H; the unused
    # halves are discarded (negligible extra MXU work, one push total).
    h_all = jnp.dot(x_ref[...], w1_ref[...],
                    preferred_element_type=jnp.float32)          # (rows, 4H) f32
    ht = h_all[0:BT, 0:H2]                                       # (B*T, 2H)
    hw = h_all[BT_al:BT_al + BW, H2:2 * H2]                      # (B*W, 2H)

    ab1 = ab1_ref[...]                 # (2, 2H): row0 = action weight, row1 = bias
    w1a = ab1[0:1, :]                  # (1, 2H)
    b1 = ab1[1:2, :]                   # (1, 2H)

    # f32 elementwise epilogue (v5e-safe).  The 4-D broadcast keeps the lane
    # axis = 2H; at these sizes any relayout cost is negligible.
    h = (ht.reshape(B, 1, T, H2)
         + hw.reshape(B, W, 1, H2)
         + act_ref[...][..., None] * w1a
         + b1)                                                   # (B, W, T, 2H)
    h = jnp.maximum(h, 0.0).reshape(N, H2)                       # (N, 2H)

    # ---- Layer 2: block-diagonal (2, 2H) weight contracted against H on the
    #      MXU → (2, N), added to b2 (2, 1) and stored in one shot. ----
    q = lax.dot_general(w2_ref[...], h,
                        dimension_numbers=(((1,), (1,)), ((), ())),
                        preferred_element_type=jnp.float32)      # (2, N)
    out_ref[...] = q + b2_ref[...]


def pack_critic_params(params):
    """One-time repack of per-head PyTorch-style params into kernel operands.

    Do this at init (outside the hot path); feed the result to critic_forward.
    """
    p1, p2 = params["q1"], params["q2"]
    H = p1["w1t"].shape[1]
    # Layer-1 weight, both heads for task and worker stacked on the lane axis,
    # stored bf16 (MXU-native on v5e/v6e/v7x, half the DMA bytes).
    w1 = jnp.concatenate([p1["w1t"], p2["w1t"], p1["w1w"], p2["w1w"]],
                         axis=1).astype(jnp.bfloat16)                # (D, 4H)
    # Action weight + bias for both heads (kept f32 for the epilogue).
    ab1 = jnp.concatenate(
        [jnp.concatenate([p1["w1a"], p2["w1a"]], axis=1),            # (1, 2H)
         jnp.concatenate([p1["b1"], p2["b1"]], axis=1)],             # (1, 2H)
        axis=0)                                                      # (2, 2H)
    # Block-diagonal layer-2 weight: each head reads only its own H slice.
    zeros_h = jnp.zeros((H,), jnp.float32)
    w2 = jnp.stack([jnp.concatenate([p1["w2"][:, 0], zeros_h]),
                    jnp.concatenate([zeros_h, p2["w2"][:, 0]])], axis=0)  # (2, 2H)
    b2 = jnp.stack([p1["b2"][:, 0], p2["b2"][:, 0]], axis=0)         # (2, 1)
    return {"w1": w1, "ab1": ab1, "w2": w2, "b2": b2}


def critic_forward(task_embed, worker_embed, action, packed):
    """packed: output of pack_critic_params.  Returns (q1, q2), each (B, W, T)."""
    B, T, D = task_embed.shape
    W = worker_embed.shape[1]
    N = B * W * T
    BT_al = _round_up(B * T, 16)       # bf16 packs 2 rows / sublane group of 8
    rows = BT_al + B * W

    vmem_spec = pl.BlockSpec(memory_space=pltpu.MemorySpace.VMEM)

    q_flat = pl.pallas_call(
        _critic_kernel,
        out_shape=jax.ShapeDtypeStruct((2, N), jnp.float32),
        in_specs=[vmem_spec] * 7,
        out_specs=vmem_spec,
        scratch_shapes=[pltpu.VMEM((rows, D), jnp.bfloat16)],
    )(task_embed, worker_embed, action,
      packed["w1"], packed["ab1"], packed["w2"], packed["b2"])

    q = q_flat.reshape(2, B, W, T)
    return q[0], q[1]


def critic_reference(task_embed, worker_embed, action, params):
    """Pure-JAX f32 mirror of the PyTorch forward (for verification)."""
    B, T, D = task_embed.shape
    W = worker_embed.shape[1]
    t_proj = jnp.broadcast_to(task_embed[:, None, :, :], (B, W, T, D))
    w_proj = jnp.broadcast_to(worker_embed[:, :, None, :], (B, W, T, D))
    x = jnp.concatenate([t_proj, w_proj, action[..., None]], axis=-1)

    def head(p):
        W1 = jnp.concatenate([p["w1t"], p["w1w"], p["w1a"]], axis=0)  # (2D+1, H)
        h = jnp.maximum(x @ W1 + p["b1"][0], 0.0)
        return (h @ p["w2"] + p["b2"][0, 0])[..., 0]

    return head(params["q1"]), head(params["q2"])


def make_params(key, hidden_dim):
    D = hidden_dim
    H = hidden_dim
    params = {}
    for head in ("q1", "q2"):
        keys = jax.random.split(key, 7)
        key = keys[0]
        params[head] = {
            "w1t": 0.1 * jax.random.normal(keys[1], (D, H), jnp.float32),
            "w1w": 0.1 * jax.random.normal(keys[2], (D, H), jnp.float32),
            "w1a": 0.1 * jax.random.normal(keys[3], (1, H), jnp.float32),
            "b1":  0.1 * jax.random.normal(keys[4], (1, H), jnp.float32),
            "w2":  0.1 * jax.random.normal(keys[5], (H, 1), jnp.float32),
            "b2":  0.1 * jax.random.normal(keys[6], (1, 1), jnp.float32),
        }
    return params


if __name__ == "__main__":
    hidden_dim = 32     # D == H == hidden_dim; input_dim = 2*hidden_dim + 1
    n_worker = 4        # W
    num_pad_tasks = 8   # T
    B = 2

    key = jax.random.PRNGKey(0)
    k_task, k_worker, k_act, k_params = jax.random.split(key, 4)

    task_embed = jax.random.normal(k_task, (B, num_pad_tasks, hidden_dim), jnp.float32)
    worker_embed = jax.random.normal(k_worker, (B, n_worker, hidden_dim), jnp.float32)
    action = jax.random.normal(k_act, (B, n_worker, num_pad_tasks), jnp.float32)

    params = make_params(k_params, hidden_dim)
    # One-time weight repack, hoisted out of the per-call hot path.
    packed = jax.block_until_ready(pack_critic_params(params))

    fwd = jax.jit(critic_forward)
    q1, q2 = fwd(task_embed, worker_embed, action, packed)
    jax.block_until_ready((q1, q2))

    q1_ref, q2_ref = critic_reference(task_embed, worker_embed, action, params)
    assert q1.shape == (B, n_worker, num_pad_tasks)
    assert q2.shape == (B, n_worker, num_pad_tasks)
    # Tolerance relaxed vs. the pure-f32 path because layer-1 MXU operands are bf16.
    assert jnp.allclose(q1, q1_ref, atol=2e-2, rtol=2e-2)
    assert jnp.allclose(q2, q2_ref, atol=2e-2, rtol=2e-2)

    print("KERNEL_OK")
</pallas_src>

<mosaic_0001>
module attributes {stable_mosaic.version = 11 : i64} {
  func.func @_critic_kernel(%arg0: memref<2x8x32xf32, #tpu.memory_space<vmem>>, %arg1: memref<2x4x32xf32, #tpu.memory_space<vmem>>, %arg2: memref<2x4x8xf32, #tpu.memory_space<vmem>>, %arg3: memref<32x128xbf16, #tpu.memory_space<vmem>>, %arg4: memref<2x64xf32, #tpu.memory_space<vmem>>, %arg5: memref<2x64xf32, #tpu.memory_space<vmem>>, %arg6: memref<2x1xf32, #tpu.memory_space<vmem>>, %arg7: memref<2x64xf32, #tpu.memory_space<vmem>>, %arg8: memref<24x32xbf16, #tpu.memory_space<vmem>>) attributes {dimension_semantics = [], scalar_prefetch = 0 : i64, scratch_operands = 1 : i64, tpu.core_type = #tpu.core_type<tc>} {
    %c0 = arith.constant 0 : index
    %c0_0 = arith.constant 0 : index
    %c0_1 = arith.constant 0 : index
    %0 = vector.load %arg0[%c0, %c0_0, %c0_1] : memref<2x8x32xf32, #tpu.memory_space<vmem>>, vector<2x8x32xf32>
    %1 = vector.shape_cast %0 : vector<2x8x32xf32> to vector<16x32xf32>
    %2 = arith.truncf %1 : vector<16x32xf32> to vector<16x32xbf16>
    %c0_2 = arith.constant 0 : index
    %c0_3 = arith.constant 0 : index
    %3 = vector.load %arg8[%c0_2, %c0_3] : memref<24x32xbf16, #tpu.memory_space<vmem>>, vector<16x32xbf16>
    tpu.vector_store %arg8[%c0_2, %c0_3], %2 {strides = array<i32>} : memref<24x32xbf16, #tpu.memory_space<vmem>>, vector<16x32xbf16>,
    %c0_4 = arith.constant 0 : index
    %c0_5 = arith.constant 0 : index
    %c0_6 = arith.constant 0 : index
    %4 = vector.load %arg1[%c0_4, %c0_5, %c0_6] : memref<2x4x32xf32, #tpu.memory_space<vmem>>, vector<2x4x32xf32>
    %5 = vector.shape_cast %4 : vector<2x4x32xf32> to vector<8x32xf32>
    %6 = arith.truncf %5 : vector<8x32xf32> to vector<8x32xbf16>
    %c16 = arith.constant 16 : index
    %c0_7 = arith.constant 0 : index
    %7 = vector.load %arg8[%c16, %c0_7] : memref<24x32xbf16, #tpu.memory_space<vmem>>, vector<8x32xbf16>
    tpu.vector_store %arg8[%c16, %c0_7], %6 {strides = array<i32>} : memref<24x32xbf16, #tpu.memory_space<vmem>>, vector<8x32xbf16>,
    %c0_8 = arith.constant 0 : index
    %c0_9 = arith.constant 0 : index
    %8 = vector.load %arg8[%c0_8, %c0_9] : memref<24x32xbf16, #tpu.memory_space<vmem>>, vector<24x32xbf16>
    %c0_10 = arith.constant 0 : index
    %c0_11 = arith.constant 0 : index
    %9 = vector.load %arg3[%c0_10, %c0_11] : memref<32x128xbf16, #tpu.memory_space<vmem>>, vector<32x128xbf16>
    %cst = arith.constant dense<0.000000e+00> : vector<24x128xf32>
    %10 = tpu.matmul %8, %9, %cst {dimension_numbers = #tpu.dot_dimension_numbers<[1], [0], [0], [1], [0, 0, 1, 1], [], []>} : vector<24x32xbf16>, vector<32x128xbf16>, vector<24x128xf32> -> vector<24x128xf32>
    %11 = vector.extract_strided_slice %10 {offsets = [0, 0], sizes = [16, 64], strides = [1, 1]} : vector<24x128xf32> to vector<16x64xf32>
    %12 = vector.extract_strided_slice %10 {offsets = [16, 64], sizes = [8, 64], strides = [1, 1]} : vector<24x128xf32> to vector<8x64xf32>
    %c0_12 = arith.constant 0 : index
    %c0_13 = arith.constant 0 : index
    %13 = vector.load %arg4[%c0_12, %c0_13] : memref<2x64xf32, #tpu.memory_space<vmem>>, vector<2x64xf32>
    %14 = vector.extract_strided_slice %13 {offsets = [0, 0], sizes = [1, 64], strides = [1, 1]} : vector<2x64xf32> to vector<1x64xf32>
    %15 = vector.extract_strided_slice %13 {offsets = [1, 0], sizes = [1, 64], strides = [1, 1]} : vector<2x64xf32> to vector<1x64xf32>
    %16 = vector.shape_cast %11 : vector<16x64xf32> to vector<2x1x8x64xf32>
    %17 = vector.shape_cast %12 : vector<8x64xf32> to vector<2x4x1x64xf32>
    %18 = vector.broadcast %16 : vector<2x1x8x64xf32> to vector<2x4x8x64xf32>
    %19 = vector.broadcast %17 : vector<2x4x1x64xf32> to vector<2x4x8x64xf32>
    %20 = arith.addf %18, %19 : vector<2x4x8x64xf32>
    %c0_14 = arith.constant 0 : index
    %c0_15 = arith.constant 0 : index
    %c0_16 = arith.constant 0 : index
    %21 = vector.load %arg2[%c0_14, %c0_15, %c0_16] : memref<2x4x8xf32, #tpu.memory_space<vmem>>, vector<2x4x8xf32>
    %22 = vector.shape_cast %21 : vector<2x4x8xf32> to vector<2x4x8x1xf32>
    %23 = vector.shape_cast %14 : vector<1x64xf32> to vector<1x1x1x64xf32>
    %24 = vector.broadcast %22 : vector<2x4x8x1xf32> to vector<2x4x8x64xf32>
    %25 = vector.broadcast %23 : vector<1x1x1x64xf32> to vector<2x4x8x64xf32>
    %26 = arith.mulf %24, %25 : vector<2x4x8x64xf32>
    %27 = arith.addf %20, %26 : vector<2x4x8x64xf32>
    %28 = vector.shape_cast %15 : vector<1x64xf32> to vector<1x1x1x64xf32>
    %29 = vector.broadcast %28 : vector<1x1x1x64xf32> to vector<2x4x8x64xf32>
    %30 = arith.addf %27, %29 : vector<2x4x8x64xf32>
    %cst_17 = arith.constant 0.000000e+00 : f32
    %31 = vector.broadcast %cst_17 : f32 to vector<2x4x8x64xf32>
    %32 = arith.maximumf %30, %31 : vector<2x4x8x64xf32>
    %33 = vector.shape_cast %32 : vector<2x4x8x64xf32> to vector<64x64xf32>
    %c0_18 = arith.constant 0 : index
    %c0_19 = arith.constant 0 : index
    %34 = vector.load %arg5[%c0_18, %c0_19] : memref<2x64xf32, #tpu.memory_space<vmem>>, vector<2x64xf32>
    %cst_20 = arith.constant dense<0.000000e+00> : vector<2x64xf32>
    %35 = tpu.matmul %34, %33, %cst_20 {dimension_numbers = #tpu.dot_dimension_numbers<[1], [1], [0], [0], [0, 0, 1, 0], [], []>} : vector<2x64xf32>, vector<64x64xf32>, vector<2x64xf32> -> vector<2x64xf32>
    %c0_21 = arith.constant 0 : index
    %c0_22 = arith.constant 0 : index
    %36 = vector.load %arg6[%c0_21, %c0_22] : memref<2x1xf32, #tpu.memory_space<vmem>>, vector<2x1xf32>
    %37 = vector.broadcast %36 : vector<2x1xf32> to vector<2x64xf32>
    %38 = arith.addf %35, %37 : vector<2x64xf32>
    %c0_23 = arith.constant 0 : index
    %c0_24 = arith.constant 0 : index
    %39 = vector.load %arg7[%c0_23, %c0_24] : memref<2x64xf32, #tpu.memory_space<vmem>>, vector<2x64xf32>
    tpu.vector_store %arg7[%c0_23, %c0_24], %38 {strides = array<i32>} : memref<2x64xf32, #tpu.memory_space<vmem>>, vector<2x64xf32>,
    return
  }
}

</mosaic_0001>

<llo_original>
// kernel: squeeze.2
$region0: #{squeeze.2}
  %s0 = inlined_call_operand.vmem [shape: f32[64], index: 0, kind: input, shape index: {}]
  %s1 = inlined_call_operand.hbm [shape: f32[2,4,8], index: 1, kind: output, shape index: {}]
  $region1: #{squeeze.2} parent=0
    #allocation0 [shape = 'u8[4096]{0}', space=vmem, size = 0x1000, scoped, tag = 'operand span for operand 1']
    #allocation1 [shape = 's32[1]{0}', space=sflag, size = 0x4, scoped, tag = 'scoped memory for squeeze.2']
    #allocation2 [shape = 'u8[8192]{0}', space=vmem, size = 0x2000, scoped, tag = 'scoped mem for output reshape']
    #allocation3 [shape = 'u8[4096]{0}', space=vmem, size = 0x1000, scoped, tag = 'scoped mem for input reshape']
    %2 = vsyncpa [#allocation1], 0
    %s4 = sshll.u32 1, 1
    %s5 = ssub.s32 %s4, 1
    %v6 = vld [vmem:[%s0] sm:%s5]
    %7 = vst [vmem:[#allocation3] sm:%s5] %v6
    %v8 = vld [vmem:[#allocation3] sm:$0x1]
    %vm9 = vcmask 64512
    %10 = vst.msk [vmem:[#allocation2] sm:$0x1] %vm9, %v8
    %v11 = vld [vmem:[#allocation3] sm:$0x1]
    %12 = vrot.lane.b32.xlu0 %v11, 120
    %v13 = vpop.permute.xlu0 %12
    %vm14 = vcmask 64512
    %s15 = scalar_lea.vmem [#allocation2], 1
    %16 = vst.msk [vmem:[%s15] sm:$0x1] %vm14, %v13
    %v17 = vld [vmem:[#allocation3] sm:$0x1]
    %18 = vrot.lane.b32.xlu0 %v17, 112
    %v19 = vpop.permute.xlu0 %18
    %vm20 = vcmask 64512
    %s21 = scalar_lea.vmem [#allocation2], 2
    %22 = vst.msk [vmem:[%s21] sm:$0x1] %vm20, %v19
    %v23 = vld [vmem:[#allocation3] sm:$0x1]
    %24 = vrot.lane.b32.xlu0 %v23, 104
    %v25 = vpop.permute.xlu0 %24
    %vm26 = vcmask 64512
    %s27 = scalar_lea.vmem [#allocation2], 3
    %28 = vst.msk [vmem:[%s27] sm:$0x1] %vm26, %v25
    %v29 = vld [vmem:[#allocation3] sm:$0x1]
    %30 = vrot.lane.b32.xlu0 %v29, 96
    %v31 = vpop.permute.xlu0 %30
    %vm32 = vcmask 64512
    %s33 = scalar_lea.vmem [#allocation2], 8
    %34 = vst.msk [vmem:[%s33] sm:$0x1] %vm32, %v31
    %v35 = vld [vmem:[#allocation3] sm:$0x1]
    %36 = vrot.lane.b32.xlu0 %v35, 88
    %v37 = vpop.permute.xlu0 %36
    %vm38 = vcmask 64512
    %s39 = scalar_lea.vmem [#allocation2], 9
    %40 = vst.msk [vmem:[%s39] sm:$0x1] %vm38, %v37
    %v41 = vld [vmem:[#allocation3] sm:$0x1]
    %42 = vrot.lane.b32.xlu0 %v41, 80
    %v43 = vpop.permute.xlu0 %42
    %vm44 = vcmask 64512
    %s45 = scalar_lea.vmem [#allocation2], 10
    %46 = vst.msk [vmem:[%s45] sm:$0x1] %vm44, %v43
    %v47 = vld [vmem:[#allocation3] sm:$0x1]
    %48 = vrot.lane.b32.xlu0 %v47, 72
    %v49 = vpop.permute.xlu0 %48
    %vm50 = vcmask 64512
    %s51 = scalar_lea.vmem [#allocation2], 11
    %52 = vst.msk [vmem:[%s51] sm:$0x1] %vm50, %v49
    %s54 = sshll.u32 1, 4
    %s55 = ssub.s32 %s54, 1
    %v57 = vld [vmem:[#allocation2] sm:%s55]
    %s58 = sshll.u32 1, 4
    %s59 = ssub.s32 %s58, 1
    %60 = vst [vmem:[#allocation0] sm:%s59] %v57
    %s61 = scalar_lea.vmem [#allocation2], 8
    %v62 = vld [vmem:[%s61] sm:%s55]
    %s63 = sshll.u32 1, 4
    %s64 = ssub.s32 %s63, 1
    %s65 = scalar_lea.vmem [#allocation0], 4
    %66 = vst [vmem:[%s65] sm:%s64] %v62
    %s68 = ssub.s32 128, 128
    %69 = vsyncadd [#allocation1], %s68
    %s71 = sshll.u32 [#allocation0], 4
    %s72 = int_to_ptr.vmem [resolvable:$true] %s71
    %74 = dma.vmem_to_hbm [thread:$0]  %s72, 128, %s1, [#allocation1]
    %75 = dma.done [#allocation1], 128
    %76 = vsyncpa [#allocation1], 1

// kernel: critic_forward.1
$region0: #{critic_forward.1}
  #allocation0 [shape = 'u32[]', space=smem, size = 0x4, offset = 0x4, fixed_abs, tag = 'smem constant byte address 0x4 - core index']
  #allocation1 [shape = 'u32[144,128]{1,0:T(1,128)}', space=vmem, size = 0x12000, scoped, tag = 'internal scratch']
  #allocation2 [shape = 'bf16[24,32]{1,0:T(8,128)(2,1)}', space=vmem, size = 0x1800, scoped, tag = 'scratch operand']
  %s0 = inlined_call_operand.hbm [shape: f32[2,8,32], index: 0, kind: input, shape index: {}]
  %s1 = inlined_call_operand.hbm [shape: f32[2,4,32], index: 1, kind: input, shape index: {}]
  %s2 = inlined_call_operand.vmem [shape: f32[2,4,8], index: 2, kind: input, shape index: {}]
  %s3 = inlined_call_operand.hbm [shape: bf16[32,128], index: 3, kind: input, shape index: {}]
  %s4 = inlined_call_operand.vmem [shape: f32[2,64], index: 4, kind: input, shape index: {}]
  %s5 = inlined_call_operand.vmem [shape: f32[2,64], index: 5, kind: input, shape index: {}]
  %s6 = inlined_call_operand.vmem [shape: f32[2,1], index: 6, kind: input, shape index: {}]
  %s7 = inlined_call_operand.vmem [shape: f32[2,64], index: 7, kind: output, shape index: {}]
  %s8 = sld [smem:[#allocation0]]
  $region50: #{critic_forward.1} parent=0
    _
  %s10 = ssub.s32 1, %s8
  %s11 = scalar_select 0, %s10, %s8
  $region1: #{critic_forward.1} parent=0
    #allocation3 [shape = 'u8[8192]{0}', space=vmem, size = 0x2000, scoped, tag = 'input window, operand 0, single buffered']
    #allocation4 [shape = 's32[1]{0}', space=sflag, size = 0x4, scoped, tag = 'scoped memory for critic_forward.1']
    #allocation5 [shape = 'u8[4096]{0}', space=vmem, size = 0x1000, scoped, tag = 'input window, operand 1, single buffered']
    #allocation6 [shape = 's32[1]{0}', space=sflag, size = 0x4, scoped, tag = 'scoped memory for critic_forward.1']
    #allocation7 [shape = 'u8[8192]{0}', space=vmem, size = 0x2000, scoped, tag = 'input window, operand 3, single buffered']
    %12 = vsyncpa [#allocation4], 0
    %13 = vsyncpa [#allocation6], 0
    // Predicated region
    $region2: #{critic_forward.1} parent=1 // pred_check
      _
    $region3: #{critic_forward.1} parent=1 // pred_check_branch
      %15 = sbr.rel (0) target = $region5
    $region4: #{critic_forward.1} parent=1 // pred_region
      %s17 = ssub.s32 256, 256
      %18 = vsyncadd [#allocation4], %s17
      %s19 = sshll.u32 [#allocation3], 4
      %s20 = int_to_ptr.vmem [resolvable:$true] %s19
      %25 = dma.hbm_to_vmem [thread:$0]  %s0, 256, %s20, [#allocation4], 128, 128, 8
    $region5: #{critic_forward.1} parent=1 // pred_fallthru
      _
    // Predicated region
    $region6: #{critic_forward.1} parent=1 // pred_check
      _
    $region7: #{critic_forward.1} parent=1 // pred_check_branch
      %27 = sbr.rel (0) target = $region9
    $region8: #{critic_forward.1} parent=1 // pred_region
      %s29 = ssub.s32 128, 128
      %30 = vsyncadd [#allocation6], %s29
      %s31 = sshll.u32 [#allocation5], 4
      %s32 = int_to_ptr.vmem [resolvable:$true] %s31
      %37 = dma.hbm_to_vmem [thread:$0]  %s1, 128, %s32, [#allocation6], 64, 64, 4
    $region9: #{critic_forward.1} parent=1 // pred_fallthru
      _
    // Predicated region
    $region10: #{critic_forward.1} parent=1 // pred_check
      _
    $region11: #{critic_forward.1} parent=1 // pred_check_branch
      %39 = sbr.rel (0) target = $region13
    $region12: #{critic_forward.1} parent=1 // pred_region
      _
    $region13: #{critic_forward.1} parent=1 // pred_fallthru
      _
    // Predicated region
    $region14: #{critic_forward.1} parent=1 // pred_check
      _
    $region15: #{critic_forward.1} parent=1 // pred_check_branch
      %41 = sbr.rel (0) target = $region17
    $region16: #{critic_forward.1} parent=1 // pred_region
      %s43 = ssub.s32 256, 256
      %44 = vsyncadd [#allocation6], %s43
      %s45 = sshll.u32 [#allocation7], 4
      %s46 = int_to_ptr.vmem [resolvable:$true] %s45
      %51 = dma.hbm_to_vmem [thread:$0]  %s3, 256, %s46, [#allocation6], 64, 64, 4
    $region17: #{critic_forward.1} parent=1 // pred_fallthru
      _
    // Predicated region
    $region18: #{critic_forward.1} parent=1 // pred_check
      _
    $region19: #{critic_forward.1} parent=1 // pred_check_branch
      %53 = sbr.rel (0) target = $region21
    $region20: #{critic_forward.1} parent=1 // pred_region
      _
    $region21: #{critic_forward.1} parent=1 // pred_fallthru
      _
    // Predicated region
    $region22: #{critic_forward.1} parent=1 // pred_check
      _
    $region23: #{critic_forward.1} parent=1 // pred_check_branch
      %55 = sbr.rel (0) target = $region25
    $region24: #{critic_forward.1} parent=1 // pred_region
      _
    $region25: #{critic_forward.1} parent=1 // pred_fallthru
      _
    // Predicated region
    $region26: #{critic_forward.1} parent=1 // pred_check
      _
    $region27: #{critic_forward.1} parent=1 // pred_check_branch
      %57 = sbr.rel (0) target = $region29
    $region28: #{critic_forward.1} parent=1 // pred_region
      _
    $region29: #{critic_forward.1} parent=1 // pred_fallthru
      _
    // Predicated region
    $region30: #{critic_forward.1} parent=1 // pred_check
      _
    $region31: #{critic_forward.1} parent=1 // pred_check_branch
      %59 = sbr.rel (0) target = $region33
    $region32: #{critic_forward.1} parent=1 // pred_region
      %60 = dma.done [#allocation4], 256
    $region33: #{critic_forward.1} parent=1 // pred_fallthru
      _
    // Predicated region
    $region34: #{critic_forward.1} parent=1 // pred_check
      _
    $region35: #{critic_forward.1} parent=1 // pred_check_branch
      %62 = sbr.rel (0) target = $region37
    $region36: #{critic_forward.1} parent=1 // pred_region
      %63 = dma.done [#allocation6], 128
    $region37: #{critic_forward.1} parent=1 // pred_fallthru
      _
    // Predicated region
    $region38: #{critic_forward.1} parent=1 // pred_check
      _
    $region39: #{critic_forward.1} parent=1 // pred_check_branch
      %65 = sbr.rel (0) target = $region41
    $region40: #{critic_forward.1} parent=1 // pred_region
      %66 = dma.done [#allocation6], 256
    $region41: #{critic_forward.1} parent=1 // pred_fallthru
      _
    %v68 = vld [vmem:[#allocation3] sm:$0xff]
    %v69 = vld [vmem:[#allocation3 + $0x8] sm:$0xff]
    %v70 = vpack.c.bf16 %v69, %v68
    %v72 = vunpack.c.l.b16 %v70
    %v73 = vunpack.c.h.b16 %v70
    %v74 = vpack.c.b16 %v72, %v72
    %v75 = vpack.c.b16 %v73, %v73
    %vm78 = vcmask 257024
    %79 = vst.msk [vmem:[#allocation2] sm:$0xf] %vm78, %v74
    %80 = vst.msk [vmem:[#allocation2 + $0x4] sm:$0xf] %vm78, %v75
    %v81 = vld [vmem:[#allocation5] sm:$0xf]
    %v82 = vld [vmem:[#allocation5 + $0x4] sm:$0xf]
    %v85 = vcombine.low %v81, %v82
    %v87 = vpack.c.bf16 %v85, %v85
    %88 = vst.msk [vmem:[#allocation2 + $0x8] sm:$0xf] %vm78, %v87
    %v89 = vld [vmem:[#allocation2] sm:$0xf]
    %v90 = vld [vmem:[#allocation2 + $0x4] sm:$0xf]
    %v91 = vld [vmem:[#allocation2 + $0x8] sm:$0xf]
    %v92 = vld [vmem:[#allocation7] sm:$0xf]
    %v93 = vld [vmem:[#allocation7 + $0x4] sm:$0xf]
    %v94 = vld [vmem:[#allocation7 + $0x8] sm:$0xf]
    %v95 = vld [vmem:[#allocation7 + $0xc] sm:$0xf]
    %v99 = vunpack.c.l.b16 %v89
    %v100 = vunpack.c.l.b16 %v90
    %v101 = vunpack.c.l.b16 %v91
    %v102 = vpack.c.b16 %v100, %v99
    %v103 = vpack.c.b16 %v101, %v101
    %v108 = vunpack.c.l.b16 %v92
    %v109 = vunpack.c.l.b16 %v93
    %v110 = vunpack.c.l.b16 %v94
    %v111 = vunpack.c.l.b16 %v95
    %v112 = vpack.c.b16 %v109, %v108
    %v113 = vpack.c.b16 %v111, %v110
    %vm116 = vcmask 261120
    %v118 = vsel %vm116, %v102, 0
    %v121 = vsel %vm116, %v103, 0
    %123 = vmatprep.subr.bf16.mxu0 0
    %124 = vmatpush1.bf16.msra.mxu0 0
    %125 = vmatprep.subr.bf16.mxu0 0
    %126 = vmatpush1.bf16.msra.mxu0 0
    %127 = vmatprep.subr.bf16.mxu0 0
    %128 = vmatpush1.bf16.msra.mxu0 0
    %129 = vmatprep.subr.bf16.mxu0 0
    %130 = vmatpush1.bf16.msra.mxu0 0
    %131 = vmatprep.subr.bf16.mxu0 0
    %132 = vmatpush1.bf16.msra.mxu0 0
    %133 = vmatprep.subr.bf16.mxu0 0
    %134 = vmatpush1.bf16.msra.mxu0 0
    %135 = vmatprep.subr.bf16.mxu0 0
    %136 = vmatpush1.bf16.msra.mxu0 %v113
    %137 = vmatprep.subr.bf16.mxu0 0
    %138 = vmatpush1.bf16.msra.mxu0 %v112
    %139 = vmatprep.subr.bf16.mxu0 0
    %140 = vmatpush2.bf16.msra.mxu0 0
    %141 = vmatprep.subr.bf16.mxu0 0
    %142 = vmatpush2.bf16.msra.mxu0 0
    %143 = vmatprep.subr.bf16.mxu0 0
    %144 = vmatpush2.bf16.msra.mxu0 0
    %145 = vmatprep.subr.bf16.mxu0 0
    %146 = vmatpush2.bf16.msra.mxu0 0
    %147 = vmatprep.subr.bf16.mxu0 0
    %148 = vmatpush2.bf16.msra.mxu0 0
    %149 = vmatprep.subr.bf16.mxu0 0
    %150 = vmatpush2.bf16.msra.mxu0 0
    %151 = vmatprep.subr.bf16.mxu0 0
    %152 = vmatpush2.bf16.msra.mxu0 0
    %153 = vmatprep.subr.bf16.mxu0 0
    %154 = vmatpush2.bf16.msra.mxu0 0
    %155 = vmatprep.mubr.bf16.mxu0 0
    %156 = vmatmul.mubr.bf16.gmra.mxu0 %v118
    %v157 = vpop.f32.mrf.mxu0
    %v158 = vadd.f32 0.0, %v157
    %v159 = vpop.f32.mrf.mxu0
    %v160 = vpop.f32.mrf.mxu0
    %v161 = vadd.f32 0.0, %v160
    %v162 = vpop.f32.mrf.mxu0
    %163 = vmatprep.mubr.bf16.mxu0 0
    %164 = vmatmul.mubr.bf16.gmra.mxu0 %v121
    %v165 = vpop.f32.mrf.mxu0
    %v166 = vadd.f32 0.0, %v165
    %v167 = vpop.f32.mrf.mxu0
    %v168 = vpop.f32.mrf.mxu0
    %v169 = vpop.f32.mrf.mxu0
    %170 = vdwg.mxu0
    %v171 = vld [vmem:[%s4] sm:$0x3]
    %v173 = vcombine.high %v166, %v166
    %v175 = vunpack.c.l.s4 1966171168
    %v176 = vunpack.c.0.s8 %v175
    %v177 = vlaneseq
    %v178 = vshrl.u32 %v177, 7
    %v179 = vsub.s32 %v176, %v178
    %v180 = vrot.slane %v166, %v179
    %v182 = vunpack.c.l.s4 1966171168
    %v183 = vunpack.c.0.s8 %v182
    %v184 = vlaneseq
    %v185 = vshrl.u32 %v184, 7
    %v186 = vsub.s32 %v183, %v185
    %v187 = vrot.slane %v173, %v186
    %v188 = vcombine.high %v180, %v180
    %v189 = vcombine.high %v187, %v187
    %v191 = vunpack.c.l.s4 1966171168
    %v192 = vunpack.c.0.s8 %v191
    %v193 = vlaneseq
    %v194 = vshrl.u32 %v193, 7
    %v195 = vsub.s32 %v192, %v194
    %v196 = vrot.slane %v180, %v195
    %v198 = vunpack.c.l.s4 1966171168
    %v199 = vunpack.c.0.s8 %v198
    %v200 = vlaneseq
    %v201 = vshrl.u32 %v200, 7
    %v202 = vsub.s32 %v199, %v201
    %v203 = vrot.slane %v187, %v202
    %v205 = vunpack.c.l.s4 1966171168
    %v206 = vunpack.c.0.s8 %v205
    %v207 = vlaneseq
    %v208 = vshrl.u32 %v207, 7
    %v209 = vsub.s32 %v206, %v208
    %v210 = vrot.slane %v188, %v209
    %v212 = vunpack.c.l.s4 1966171168
    %v213 = vunpack.c.0.s8 %v212
    %v214 = vlaneseq
    %v215 = vshrl.u32 %v214, 7
    %v216 = vsub.s32 %v213, %v215
    %v217 = vrot.slane %v189, %v216
    %v218 = vcombine.high %v196, %v196
    %v219 = vcombine.high %v203, %v203
    %v220 = vcombine.high %v210, %v210
    %v221 = vcombine.high %v217, %v217
    %v222 = vlaneseq
    %v223 = vshrl.u32 %v222, 7
    %v224 = vsub.s32 0, %v223
    %v225 = vrot.slane %v196, %v224
    %v226 = vlaneseq
    %v227 = vshrl.u32 %v226, 7
    %v228 = vsub.s32 0, %v227
    %v229 = vrot.slane %v210, %v228
    %v230 = vlaneseq
    %v231 = vshrl.u32 %v230, 7
    %v232 = vsub.s32 0, %v231
    %v233 = vrot.slane %v218, %v232
    %v234 = vlaneseq
    %v235 = vshrl.u32 %v234, 7
    %v236 = vsub.s32 0, %v235
    %v237 = vrot.slane %v220, %v236
    %v238 = vlaneseq
    %v239 = vshrl.u32 %v238, 7
    %v240 = vsub.s32 0, %v239
    %v241 = vrot.slane %v203, %v240
    %v242 = vlaneseq
    %v243 = vshrl.u32 %v242, 7
    %v244 = vsub.s32 0, %v243
    %v245 = vrot.slane %v217, %v244
    %v246 = vlaneseq
    %v247 = vshrl.u32 %v246, 7
    %v248 = vsub.s32 0, %v247
    %v249 = vrot.slane %v219, %v248
    %v250 = vlaneseq
    %v251 = vshrl.u32 %v250, 7
    %v252 = vsub.s32 0, %v251
    %v253 = vrot.slane %v221, %v252
    %254 = vrot.lane.b32.xlu0 %v225, 64
    %v255 = vpop.permute.xlu0 %254
    %256 = vrot.lane.b32.xlu0 %v229, 64
    %v257 = vpop.permute.xlu0 %256
    %258 = vrot.lane.b32.xlu0 %v233, 64
    %v259 = vpop.permute.xlu0 %258
    %260 = vrot.lane.b32.xlu0 %v237, 64
    %v261 = vpop.permute.xlu0 %260
    %262 = vrot.lane.b32.xlu0 %v241, 64
    %v263 = vpop.permute.xlu0 %262
    %264 = vrot.lane.b32.xlu0 %v245, 64
    %v265 = vpop.permute.xlu0 %264
    %266 = vrot.lane.b32.xlu0 %v249, 64
    %v267 = vpop.permute.xlu0 %266
    %268 = vrot.lane.b32.xlu0 %v253, 64
    %v269 = vpop.permute.xlu0 %268
    %v278 = vadd.f32 %v158, %v255
    %v279 = vadd.f32 %v158, %v257
    %v280 = vadd.f32 %v158, %v259
    %v281 = vadd.f32 %v158, %v261
    %v282 = vadd.f32 %v161, %v263
    %v283 = vadd.f32 %v161, %v265
    %v284 = vadd.f32 %v161, %v267
    %v285 = vadd.f32 %v161, %v269
    %v286 = vld [vmem:[%s2] sm:$0xf]
    %v287 = vld [vmem:[%s2 + $0x4] sm:$0xf]
    %v288 = vlaneseq
    %v289 = vshrl.u32 %v288, 7
    %v290 = vsub.s32 0, %v289
    %v291 = vrot.slane %v286, %v290
    %293 = vbcast.lane.b32.xlu0 %v291, 256
    %v294 = vpop.permute.xlu0 %293
    %v295 = vlaneseq
    %v296 = vshrl.u32 %v295, 7
    %v297 = vsub.s32 1, %v296
    %v298 = vrot.slane %v286, %v297
    %300 = vbcast.lane.b32.xlu0 %v298, 256
    %v301 = vpop.permute.xlu0 %300
    %v302 = vlaneseq
    %v303 = vshrl.u32 %v302, 7
    %v304 = vsub.s32 2, %v303
    %v305 = vrot.slane %v286, %v304
    %307 = vbcast.lane.b32.xlu0 %v305, 256
    %v308 = vpop.permute.xlu0 %307
    %v309 = vlaneseq
    %v310 = vshrl.u32 %v309, 7
    %v311 = vsub.s32 3, %v310
    %v312 = vrot.slane %v286, %v311
    %314 = vbcast.lane.b32.xlu0 %v312, 256
    %v315 = vpop.permute.xlu0 %314
    %v316 = vlaneseq
    %v317 = vshrl.u32 %v316, 7
    %v318 = vsub.s32 0, %v317
    %v319 = vrot.slane %v287, %v318
    %321 = vbcast.lane.b32.xlu0 %v319, 256
    %v322 = vpop.permute.xlu0 %321
    %v323 = vlaneseq
    %v324 = vshrl.u32 %v323, 7
    %v325 = vsub.s32 1, %v324
    %v326 = vrot.slane %v287, %v325
    %328 = vbcast.lane.b32.xlu0 %v326, 256
    %v329 = vpop.permute.xlu0 %328
    %v330 = vlaneseq
    %v331 = vshrl.u32 %v330, 7
    %v332 = vsub.s32 2, %v331
    %v333 = vrot.slane %v287, %v332
    %335 = vbcast.lane.b32.xlu0 %v333, 256
    %v336 = vpop.permute.xlu0 %335
    %v337 = vlaneseq
    %v338 = vshrl.u32 %v337, 7
    %v339 = vsub.s32 3, %v338
    %v340 = vrot.slane %v287, %v339
    %342 = vbcast.lane.b32.xlu0 %v340, 256
    %v343 = vpop.permute.xlu0 %342
    %v344 = vlaneseq
    %v345 = vshrl.u32 %v344, 7
    %v346 = vsub.s32 0, %v345
    %v347 = vrot.slane %v171, %v346
    %v348 = vmul.f32 %v294, %v347
    %v349 = vmul.f32 %v301, %v347
    %v350 = vmul.f32 %v308, %v347
    %v351 = vmul.f32 %v315, %v347
    %v352 = vmul.f32 %v322, %v347
    %v353 = vmul.f32 %v329, %v347
    %v354 = vmul.f32 %v336, %v347
    %v355 = vmul.f32 %v343, %v347
    %v356 = vadd.f32 %v278, %v348
    %v357 = vadd.f32 %v279, %v349
    %v358 = vadd.f32 %v280, %v350
    %v359 = vadd.f32 %v281, %v351
    %v360 = vadd.f32 %v282, %v352
    %v361 = vadd.f32 %v283, %v353
    %v362 = vadd.f32 %v284, %v354
    %v363 = vadd.f32 %v285, %v355
    %v364 = vlaneseq
    %v365 = vshrl.u32 %v364, 7
    %v366 = vsub.s32 1, %v365
    %v367 = vrot.slane %v171, %v366
    %v368 = vadd.f32 %v356, %v367
    %v369 = vadd.f32 %v357, %v367
    %v370 = vadd.f32 %v358, %v367
    %v371 = vadd.f32 %v359, %v367
    %v372 = vadd.f32 %v360, %v367
    %v373 = vadd.f32 %v361, %v367
    %v374 = vadd.f32 %v362, %v367
    %v375 = vadd.f32 %v363, %v367
    %v376 = vmax.f32 %v368, 0.0
    %v377 = vmax.f32 %v369, 0.0
    %v378 = vmax.f32 %v370, 0.0
    %v379 = vmax.f32 %v371, 0.0
    %v380 = vmax.f32 %v372, 0.0
    %v381 = vmax.f32 %v373, 0.0
    %v382 = vmax.f32 %v374, 0.0
    %v383 = vmax.f32 %v375, 0.0
    %v384 = vld [vmem:[%s5] sm:$0x3]
    %v385 = vld [vmem:[%s6] sm:$0x3]
    %387 = vset.pattern.permute.xlu0 0
    %388 = vperm.xlu0 %387, %v385
    %v389 = vpop.permute.xlu0 %388
    %vm391 = vcmask 523264
    %v393 = vsel %vm391, %v384, 0
    %v396 = vsel %vm391, %v376, 0
    %v399 = vsel %vm391, %v377, 0
    %v402 = vsel %vm391, %v378, 0
    %v405 = vsel %vm391, %v379, 0
    %v408 = vsel %vm391, %v380, 0
    %v411 = vsel %vm391, %v381, 0
    %v414 = vsel %vm391, %v382, 0
    %v417 = vsel %vm391, %v383, 0
    %419 = vmatprep.subr.mxu0 0.0
    %420 = vmatpush1.xpose.msra.mxu0 0.0
    %421 = vmatprep.subr.mxu0 0.0
    %422 = vmatpush1.xpose.msra.mxu0 0.0
    %423 = vmatprep.subr.mxu0 0.0
    %424 = vmatpush1.xpose.msra.mxu0 0.0
    %425 = vmatprep.subr.mxu0 0.0
    %426 = vmatpush1.xpose.msra.mxu0 0.0
    %427 = vmatprep.subr.mxu0 0.0
    %428 = vmatpush1.xpose.msra.mxu0 0.0
    %429 = vmatprep.subr.mxu0 0.0
    %430 = vmatpush1.xpose.msra.mxu0 0.0
    %431 = vmatprep.subr.mxu0 0.0
    %432 = vmatpush1.xpose.msra.mxu0 0.0
    %433 = vmatprep.subr.mxu0 0.0
    %434 = vmatpush1.xpose.msra.mxu0 0.0
    %435 = vmatprep.subr.mxu0 0.0
    %436 = vmatpush1.xpose.msra.mxu0 %v417
    %437 = vmatprep.subr.mxu0 0.0
    %438 = vmatpush1.xpose.msra.mxu0 %v414
    %439 = vmatprep.subr.mxu0 0.0
    %440 = vmatpush1.xpose.msra.mxu0 %v411
    %441 = vmatprep.subr.mxu0 0.0
    %442 = vmatpush1.xpose.msra.mxu0 %v408
    %443 = vmatprep.subr.mxu0 0.0
    %444 = vmatpush1.xpose.msra.mxu0 %v405
    %445 = vmatprep.subr.mxu0 0.0
    %446 = vmatpush1.xpose.msra.mxu0 %v402
    %447 = vmatprep.subr.mxu0 0.0
    %448 = vmatpush1.xpose.msra.mxu0 %v399
    %449 = vmatprep.subr.mxu0 0.0
    %450 = vmatpush1.xpose.msra.mxu0 %v396
    %451 = vmatprep.subr.mxu0 0.0
    %452 = vmatpush2.xpose.msra.mxu0 0.0
    %453 = vmatprep.subr.mxu0 0.0
    %454 = vmatpush2.xpose.msra.mxu0 0.0
    %455 = vmatprep.subr.mxu0 0.0
    %456 = vmatpush2.xpose.msra.mxu0 0.0
    %457 = vmatprep.subr.mxu0 0.0
    %458 = vmatpush2.xpose.msra.mxu0 0.0
    %459 = vmatprep.subr.mxu0 0.0
    %460 = vmatpush2.xpose.msra.mxu0 0.0
    %461 = vmatprep.subr.mxu0 0.0
    %462 = vmatpush2.xpose.msra.mxu0 0.0
    %463 = vmatprep.subr.mxu0 0.0
    %464 = vmatpush2.xpose.msra.mxu0 0.0
    %465 = vmatprep.subr.mxu0 0.0
    %466 = vmatpush2.xpose.msra.mxu0 0.0
    %467 = vmatprep.subr.mxu0 0.0
    %468 = vmatpush2.xpose.msra.mxu0 0.0
    %469 = vmatprep.subr.mxu0 0.0
    %470 = vmatpush2.xpose.msra.mxu0 0.0
    %471 = vmatprep.subr.mxu0 0.0
    %472 = vmatpush2.xpose.msra.mxu0 0.0
    %473 = vmatprep.subr.mxu0 0.0
    %474 = vmatpush2.xpose.msra.mxu0 0.0
    %475 = vmatprep.subr.mxu0 0.0
    %476 = vmatpush2.xpose.msra.mxu0 0.0
    %477 = vmatprep.subr.mxu0 0.0
    %478 = vmatpush2.xpose.msra.mxu0 0.0
    %479 = vmatprep.subr.mxu0 0.0
    %480 = vmatpush2.xpose.msra.mxu0 0.0
    %481 = vmatprep.subr.mxu0 0.0
    %482 = vmatpush2.xpose.msra.mxu0 0.0
    %483 = vmatprep.mubr.f32.mxu0 0.0
    %484 = vmatmul.mubr.f32.gmra.mxu0 %v393
    %v485 = vpop.f32.mrf.mxu0
    %v486 = vadd.f32 %v389, %v485
    %v487 = vpop.f32.mrf.mxu0
    %488 = vdwg.mxu0
    %vm489 = vcmask 517120
    %490 = vst.msk [vmem:[%s7] sm:$0x3] %vm489, %v486
    // Predicated region
    $region42: #{critic_forward.1} parent=1 // pred_check
      _
    $region43: #{critic_forward.1} parent=1 // pred_check_branch
      %492 = sbr.rel (0) target = $region45
    $region44: #{critic_forward.1} parent=1 // pred_region
      _
    $region45: #{critic_forward.1} parent=1 // pred_fallthru
      _
    // Predicated region
    $region46: #{critic_forward.1} parent=1 // pred_check
      _
    $region47: #{critic_forward.1} parent=1 // pred_check_branch
      %494 = sbr.rel (0) target = $region49
    $region48: #{critic_forward.1} parent=1 // pred_region
      _
    $region49: #{critic_forward.1} parent=1 // pred_fallthru
      _
    %495 = vsyncpa [#allocation4], 1
    %496 = vsyncpa [#allocation6], 1

</llo_original>
